<compile_context>
chip_gen: v7x
topology: tpu7x:2x2x1
jax: 0.10.0
libtpu: 0.0.40
codegen_flags: <defaults>
</compile_context>

<pallas_src>
import jax
import jax.numpy as jnp
from jax.experimental import pallas as pl
from jax.experimental.pallas import tpu as pltpu


def mlp_kernel(x_ref, w1_ref, b1_ref, w23_ref, b23_ref, o_ref):
    # fc1: bf16 inputs on the MXU, f32 accumulation; bias + ReLU in f32.
    # (Dropout = identity in eval mode.)
    h1 = jnp.dot(x_ref[...], w1_ref[...], preferred_element_type=jnp.float32)
    h1 = jnp.maximum(h1 + b1_ref[...], 0.0)
    # Fused fc2+fc3 head: elementwise multiply + lane reduction (XLU) instead
    # of an MXU matmul whose result tile would be 1 lane wide.
    z = jnp.sum(h1 * w23_ref[...], axis=-1, keepdims=True) + b23_ref[...]
    o_ref[...] = jax.nn.sigmoid(z).astype(o_ref.dtype)


def network_forward(x, params, *, tile_n=1024):
    """x: (N, input_dim) float32. Returns (N, 1) float32."""
    w1, b1, w2, b2, w3, b3 = params
    N, D = x.shape
    H1 = w1.shape[1]  # 32

    # ---- wrapper-side param prep (inference-only fusion of fc2/fc3) ----
    w23 = (w2 @ w3).T.astype(jnp.float32)        # (1, H1)
    b23 = (b2 @ w3 + b3).astype(jnp.float32)     # (1, 1)
    b1f = b1.astype(jnp.float32)                 # (1, H1)

    # bf16 streaming of the dominant (batch) tensor and the fc1 weights;
    # all accumulation / activations stay in f32.
    x_bf = x.astype(jnp.bfloat16)
    w1_bf = w1.astype(jnp.bfloat16)

    # ---- batch tiling (multiple of 8 rows; pad N to a whole number of tiles) ----
    tile_n = max(8, min(tile_n, pl.next_power_of_2(max(N, 1))))
    n_pad = pl.cdiv(N, tile_n) * tile_n
    if n_pad != N:
        x_bf = jnp.pad(x_bf, ((0, n_pad - N), (0, 0)))
    grid = (n_pad // tile_n,)

    # Per-tile VMEM footprint: 2 bufs * tile_n*D*2B (x) + tiny weights + out,
    # well under the 32 MiB scoped / 64 MiB physical VMEM of v7x.
    cost = pl.CostEstimate(
        flops=2 * n_pad * D * H1 + 4 * n_pad * H1,
        transcendentals=n_pad,
        bytes_accessed=n_pad * D * 2 + D * H1 * 2 + H1 * 12 + n_pad * 4,
    )

    out = pl.pallas_call(
        mlp_kernel,
        out_shape=jax.ShapeDtypeStruct((n_pad, 1), jnp.float32),
        grid=grid,
        in_specs=[
            pl.BlockSpec((tile_n, D), lambda i: (i, 0)),   # x: streamed per tile
            pl.BlockSpec((D, H1), lambda i: (0, 0)),       # w1: resident
            pl.BlockSpec((1, H1), lambda i: (0, 0)),       # b1: resident
            pl.BlockSpec((1, H1), lambda i: (0, 0)),       # fused w23 row
            pl.BlockSpec((1, 1), lambda i: (0, 0)),        # fused b23
        ],
        out_specs=pl.BlockSpec((tile_n, 1), lambda i: (i, 0)),
        compiler_params=pltpu.CompilerParams(
            dimension_semantics=("parallel",),
            vmem_limit_bytes=32 * 1024 * 1024,
        ),
        cost_estimate=cost,
    )(x_bf, w1_bf, b1f, w23, b23)

    return out[:N]


def init_params(key, input_dim):
    """Deterministic PyTorch-style (kaiming-uniform-ish) init."""
    def linear_init(key, fan_in, fan_out):
        kw, kb = jax.random.split(key)
        bound = 1.0 / jnp.sqrt(jnp.float32(fan_in))
        w = jax.random.uniform(kw, (fan_in, fan_out), jnp.float32, -bound, bound)
        b = jax.random.uniform(kb, (1, fan_out), jnp.float32, -bound, bound)
        return w, b

    k1, k2, k3 = jax.random.split(key, 3)
    w1, b1 = linear_init(k1, input_dim, 32)
    w2, b2 = linear_init(k2, 32, 16)
    w3, b3 = linear_init(k3, 16, 1)
    return (w1, b1, w2, b2, w3, b3)


def reference_forward(x, params):
    w1, b1, w2, b2, w3, b3 = params
    h = jnp.maximum(x @ w1 + b1, 0.0)
    h = h @ w2 + b2
    h = h @ w3 + b3
    return jax.nn.sigmoid(h)


if __name__ == "__main__":
    key = jax.random.PRNGKey(0)
    kx, kp = jax.random.split(key)

    batch = 8
    input_dim = 64            # small synthetic stand-in for the 20newsgroup feature dim
    x = jax.random.normal(kx, (batch, input_dim), jnp.float32)
    params = init_params(kp, input_dim)

    out = jax.block_until_ready(network_forward(x, params))
    ref = reference_forward(x, params)

    assert out.shape == (batch, 1)
    # bf16 streaming of x/w1 introduces ~1e-3-level differences vs the f32 reference.
    assert jnp.allclose(out, ref, atol=2e-2, rtol=2e-2), float(jnp.max(jnp.abs(out - ref)))

    print("KERNEL_OK")
</pallas_src>

<mosaic_0001>
module attributes {stable_mosaic.version = 11 : i64} {
  func.func @mlp_kernel(%arg0: i32, %arg1: memref<8x64xbf16, #tpu.memory_space<vmem>>, %arg2: memref<64x32xbf16, #tpu.memory_space<vmem>>, %arg3: memref<1x32xf32, #tpu.memory_space<vmem>>, %arg4: memref<1x32xf32, #tpu.memory_space<vmem>>, %arg5: memref<1x1xf32, #tpu.memory_space<vmem>>, %arg6: memref<8x1xf32, #tpu.memory_space<vmem>>) attributes {dimension_semantics = [#tpu.dimension_semantics<parallel>], iteration_bounds = array<i64: 1>, scalar_prefetch = 0 : i64, scratch_operands = 0 : i64, tpu.core_type = #tpu.core_type<tc>, window_params = [{transform_indices = @transform_0, window_bounds = array<i64: 8, 64>}, {pipeline_mode = #tpu.pipeline_mode<synchronous>, transform_indices = @transform_1, window_bounds = array<i64: 64, 32>}, {pipeline_mode = #tpu.pipeline_mode<synchronous>, transform_indices = @transform_2, window_bounds = array<i64: 1, 32>}, {pipeline_mode = #tpu.pipeline_mode<synchronous>, transform_indices = @transform_3, window_bounds = array<i64: 1, 32>}, {pipeline_mode = #tpu.pipeline_mode<synchronous>, transform_indices = @transform_4, window_bounds = array<i64: 1, 1>}, {transform_indices = @transform_5, window_bounds = array<i64: 8, 1>}]} {
    %c0 = arith.constant 0 : index
    %c0_0 = arith.constant 0 : index
    %0 = vector.load %arg1[%c0, %c0_0] : memref<8x64xbf16, #tpu.memory_space<vmem>>, vector<8x64xbf16>
    %c0_1 = arith.constant 0 : index
    %c0_2 = arith.constant 0 : index
    %1 = vector.load %arg2[%c0_1, %c0_2] : memref<64x32xbf16, #tpu.memory_space<vmem>>, vector<64x32xbf16>
    %cst = arith.constant dense<0.000000e+00> : vector<8x32xf32>
    %2 = tpu.matmul %0, %1, %cst {dimension_numbers = #tpu.dot_dimension_numbers<[1], [0], [0], [1], [0, 0, 1, 1], [], []>} : vector<8x64xbf16>, vector<64x32xbf16>, vector<8x32xf32> -> vector<8x32xf32>
    %c0_3 = arith.constant 0 : index
    %c0_4 = arith.constant 0 : index
    %3 = vector.load %arg3[%c0_3, %c0_4] : memref<1x32xf32, #tpu.memory_space<vmem>>, vector<1x32xf32>
    %4 = vector.broadcast %3 : vector<1x32xf32> to vector<8x32xf32>
    %5 = arith.addf %2, %4 : vector<8x32xf32>
    %cst_5 = arith.constant 0.000000e+00 : f32
    %6 = vector.broadcast %cst_5 : f32 to vector<8x32xf32>
    %7 = arith.maximumf %5, %6 : vector<8x32xf32>
    %c0_6 = arith.constant 0 : index
    %c0_7 = arith.constant 0 : index
    %8 = vector.load %arg4[%c0_6, %c0_7] : memref<1x32xf32, #tpu.memory_space<vmem>>, vector<1x32xf32>
    %9 = vector.broadcast %8 : vector<1x32xf32> to vector<8x32xf32>
    %10 = arith.mulf %7, %9 : vector<8x32xf32>
    %cst_8 = arith.constant dense<0.000000e+00> : vector<8xf32>
    %11 = vector.multi_reduction <add>, %10, %cst_8 [1] : vector<8x32xf32> to vector<8xf32>
    %12 = vector.shape_cast %11 : vector<8xf32> to vector<8x1xf32>
    %c0_9 = arith.constant 0 : index
    %c0_10 = arith.constant 0 : index
    %13 = vector.load %arg5[%c0_9, %c0_10] : memref<1x1xf32, #tpu.memory_space<vmem>>, vector<1x1xf32>
    %14 = vector.broadcast %13 : vector<1x1xf32> to vector<8x1xf32>
    %15 = arith.addf %12, %14 : vector<8x1xf32>
    %16 = arith.negf %15 : vector<8x1xf32>
    %17 = math.exp %16 : vector<8x1xf32>
    %cst_11 = arith.constant 1.000000e+00 : f32
    %18 = vector.broadcast %cst_11 : f32 to vector<8x1xf32>
    %19 = arith.addf %18, %17 : vector<8x1xf32>
    %20 = arith.divf %18, %19 : vector<8x1xf32>
    %c0_12 = arith.constant 0 : index
    %c0_13 = arith.constant 0 : index
    %21 = vector.load %arg6[%c0_12, %c0_13] : memref<8x1xf32, #tpu.memory_space<vmem>>, vector<8x1xf32>
    tpu.vector_store %arg6[%c0_12, %c0_13], %20 {strides = array<i32>} : memref<8x1xf32, #tpu.memory_space<vmem>>, vector<8x1xf32>,
    return
  }
  func.func @transform_0(%arg0: i32) -> (i32, i32) {
    %c0_i32 = arith.constant 0 : i32
    %c0_i32_0 = arith.constant 0 : i32
    return %arg0, %c0_i32 : i32, i32
  }
  func.func @transform_1(%arg0: i32) -> (i32, i32) {
    %c0_i32 = arith.constant 0 : i32
    %c0_i32_0 = arith.constant 0 : i32
    %c0_i32_1 = arith.constant 0 : i32
    return %c0_i32, %c0_i32_0 : i32, i32
  }
  func.func @transform_2(%arg0: i32) -> (i32, i32) {
    %c0_i32 = arith.constant 0 : i32
    %c0_i32_0 = arith.constant 0 : i32
    %c0_i32_1 = arith.constant 0 : i32
    return %c0_i32, %c0_i32_0 : i32, i32
  }
  func.func @transform_3(%arg0: i32) -> (i32, i32) {
    %c0_i32 = arith.constant 0 : i32
    %c0_i32_0 = arith.constant 0 : i32
    %c0_i32_1 = arith.constant 0 : i32
    return %c0_i32, %c0_i32_0 : i32, i32
  }
  func.func @transform_4(%arg0: i32) -> (i32, i32) {
    %c0_i32 = arith.constant 0 : i32
    %c0_i32_0 = arith.constant 0 : i32
    %c0_i32_1 = arith.constant 0 : i32
    return %c0_i32, %c0_i32_0 : i32, i32
  }
  func.func @transform_5(%arg0: i32) -> (i32, i32) {
    %c0_i32 = arith.constant 0 : i32
    %c0_i32_0 = arith.constant 0 : i32
    return %arg0, %c0_i32 : i32, i32
  }
}

</mosaic_0001>

<llo_original>
// kernel: tpu_custom_call.1
$region0: #{tpu_custom_call.1}
  #allocation0 [shape = 'u32[]', space=smem, size = 0x4, offset = 0x4, fixed_abs, tag = 'smem constant byte address 0x4 - core index']
  #allocation1 [shape = 'u32[144,128]{1,0:T(1,128)}', space=vmem, size = 0x12000, scoped, tag = 'internal scratch']
  #allocation2 [shape = 'f32[1,1]{1,0:T(1,128)S(1)}', space=vmem, size = 0x200, scoped, tag = 'scoped memory for tpu_custom_call.1']
  %s0 = inlined_call_operand.vmem [shape: bf16[8,64], index: 0, kind: input, shape index: {}]
  %s1 = inlined_call_operand.vmem [shape: bf16[64,32], index: 1, kind: input, shape index: {}]
  %s2 = inlined_call_operand.vmem [shape: f32[1,32], index: 2, kind: input, shape index: {}]
  %s3 = inlined_call_operand.vmem [shape: f32[1,32], index: 3, kind: input, shape index: {}]
  %s4 = inlined_call_operand.<no memory space> [shape: f32[1,1], index: 4, kind: input, shape index: {}]
  %s5 = inlined_call_operand.vmem [shape: f32[8,1], index: 5, kind: output, shape index: {}]
  %s6 = sld [smem:[#allocation0]]
  $region30: #{tpu_custom_call.1} parent=0
    _
  %s8 = ssub.s32 1, %s6
  %s9 = scalar_select 0, %s8, %s6
  %v10 = vstv %s4
  %11 = vst [vmem:[#allocation2] sm:$0x1] %v10
  // Predicated region
  $region2: #{tpu_custom_call.1} parent=0 // pred_check
    _
  $region3: #{tpu_custom_call.1} parent=0 // pred_check_branch
    %13 = sbr.rel (0) target = $region5
  $region4: #{tpu_custom_call.1} parent=0 // pred_region
    _
  $region5: #{tpu_custom_call.1} parent=0 // pred_fallthru
    _
  // Predicated region
  $region6: #{tpu_custom_call.1} parent=0 // pred_check
    _
  $region7: #{tpu_custom_call.1} parent=0 // pred_check_branch
    %15 = sbr.rel (0) target = $region9
  $region8: #{tpu_custom_call.1} parent=0 // pred_region
    _
  $region9: #{tpu_custom_call.1} parent=0 // pred_fallthru
    _
  // Predicated region
  $region10: #{tpu_custom_call.1} parent=0 // pred_check
    _
  $region11: #{tpu_custom_call.1} parent=0 // pred_check_branch
    %17 = sbr.rel (0) target = $region13
  $region12: #{tpu_custom_call.1} parent=0 // pred_region
    _
  $region13: #{tpu_custom_call.1} parent=0 // pred_fallthru
    _
  // Predicated region
  $region14: #{tpu_custom_call.1} parent=0 // pred_check
    _
  $region15: #{tpu_custom_call.1} parent=0 // pred_check_branch
    %19 = sbr.rel (0) target = $region17
  $region16: #{tpu_custom_call.1} parent=0 // pred_region
    _
  $region17: #{tpu_custom_call.1} parent=0 // pred_fallthru
    _
  // Predicated region
  $region18: #{tpu_custom_call.1} parent=0 // pred_check
    _
  $region19: #{tpu_custom_call.1} parent=0 // pred_check_branch
    %21 = sbr.rel (0) target = $region21
  $region20: #{tpu_custom_call.1} parent=0 // pred_region
    _
  $region21: #{tpu_custom_call.1} parent=0 // pred_fallthru
    _
  %v23 = vld [vmem:[%s0] sm:$0xf]
  %v24 = vld [vmem:[%s1] sm:$0xf]
  %v25 = vld [vmem:[%s1 + $0x4] sm:$0xf]
  %v26 = vld [vmem:[%s1 + $0x8] sm:$0xf]
  %v27 = vld [vmem:[%s1 + $0xc] sm:$0xf]
  %v28 = vld [vmem:[%s1 + $0x10] sm:$0xf]
  %v29 = vld [vmem:[%s1 + $0x14] sm:$0xf]
  %v30 = vld [vmem:[%s1 + $0x18] sm:$0xf]
  %v31 = vld [vmem:[%s1 + $0x1c] sm:$0xf]
  %v32 = vld [vmem:[%s2] sm:$0x1]
  %v34 = vlaneseq
  %v35 = vshrl.u32 %v34, 7
  %v36 = vsub.s32 0, %v35
  %v37 = vrot.slane %v32, %v36
  %v47 = vunpack.c.l.b16 %v24
  %v48 = vunpack.c.l.b16 %v25
  %v49 = vunpack.c.l.b16 %v26
  %v50 = vunpack.c.l.b16 %v27
  %v51 = vunpack.c.l.b16 %v28
  %v52 = vunpack.c.l.b16 %v29
  %v53 = vunpack.c.l.b16 %v30
  %v54 = vunpack.c.l.b16 %v31
  %v55 = vpack.c.b16 %v48, %v47
  %v56 = vpack.c.b16 %v50, %v49
  %v57 = vpack.c.b16 %v52, %v51
  %v58 = vpack.c.b16 %v54, %v53
  %vm63 = vcmask 523264
  %v65 = vsel %vm63, %v23, 0
  %67 = vmatprep.subr.bf16.mxu0 0
  %68 = vmatpush1.bf16.msra.mxu0 %v55
  %69 = vmatprep.subr.bf16.mxu0 0
  %70 = vmatpush1.bf16.msra.mxu0 %v56
  %71 = vmatprep.subr.bf16.mxu0 0
  %72 = vmatpush1.bf16.msra.mxu0 %v57
  %73 = vmatprep.subr.bf16.mxu0 0
  %74 = vmatpush1.bf16.msra.mxu0 %v58
  %75 = vmatprep.subr.bf16.mxu0 0
  %76 = vmatpush1.bf16.msra.mxu0 0
  %77 = vmatprep.subr.bf16.mxu0 0
  %78 = vmatpush1.bf16.msra.mxu0 0
  %79 = vmatprep.subr.bf16.mxu0 0
  %80 = vmatpush1.bf16.msra.mxu0 0
  %81 = vmatprep.subr.bf16.mxu0 0
  %82 = vmatpush1.bf16.msra.mxu0 0
  %83 = vmatprep.subr.bf16.mxu0 0
  %84 = vmatpush1.bf16.msra.mxu0 0
  %85 = vmatprep.subr.bf16.mxu0 0
  %86 = vmatpush1.bf16.msra.mxu0 0
  %87 = vmatprep.subr.bf16.mxu0 0
  %88 = vmatpush1.bf16.msra.mxu0 0
  %89 = vmatprep.subr.bf16.mxu0 0
  %90 = vmatpush1.bf16.msra.mxu0 0
  %91 = vmatprep.subr.bf16.mxu0 0
  %92 = vmatpush1.bf16.msra.mxu0 0
  %93 = vmatprep.subr.bf16.mxu0 0
  %94 = vmatpush1.bf16.msra.mxu0 0
  %95 = vmatprep.subr.bf16.mxu0 0
  %96 = vmatpush1.bf16.msra.mxu0 0
  %97 = vmatprep.subr.bf16.mxu0 0
  %98 = vmatpush1.bf16.msra.mxu0 0
  %99 = vmatprep.mubr.bf16.mxu0 0
  %100 = vmatmul.mubr.bf16.gmra.mrb[0].mxu0 %v65
  %v101 = vpop.f32.mrb[0].mxu0
  %v102 = vadd.f32 %v37, %v101
  %v103 = vpop.f32.mrb[0].mxu0
  %v104 = vpop.f32.mrb[0].mxu0
  %v105 = vpop.f32.mrb[0].mxu0
  %106 = vdwg.mxu0
  %v107 = vmax.f32 %v102, 0.0
  %v108 = vld [vmem:[%s3] sm:$0x1]
  %v110 = vlaneseq
  %v111 = vshrl.u32 %v110, 7
  %v112 = vsub.s32 0, %v111
  %v113 = vrot.slane %v108, %v112
  %v115 = vmul.f32 %v107, %v113
  %vm116 = vcmask 261120
  %v117 = vsel %vm116, %v115, 0.0
  %118 = vadd.xlane.f32.xlu0 %v117
  %v119 = vpop.xlane.xlu0 %118
  %v120 = vld [vmem:[#allocation2] sm:$0x1]
  %v122 = vlaneseq
  %v123 = vshrl.u32 %v122, 7
  %v124 = vsub.s32 0, %v123
  %v125 = vrot.slane %v120, %v124
  %v127 = vadd.f32 %v119, %v125
  %v128 = vxor.u32 %v127, 2147483648
  %v129 = vmul.f32 %v128, 1.442695
  %v130 = vpow.pop %v129
  %v131 = vadd.f32 %v130, 1.0
  %v132 = vrcp.pop %v131
  %v133 = vmul.f32 1.0, %v132
  %vm134 = vcmask 7168
  %135 = vst.msk [vmem:[%s5] sm:$0xff] %vm134, %v133
  // Predicated region
  $region22: #{tpu_custom_call.1} parent=0 // pred_check
    _
  $region23: #{tpu_custom_call.1} parent=0 // pred_check_branch
    %137 = sbr.rel (0) target = $region25
  $region24: #{tpu_custom_call.1} parent=0 // pred_region
    _
  $region25: #{tpu_custom_call.1} parent=0 // pred_fallthru
    _
  // Predicated region
  $region26: #{tpu_custom_call.1} parent=0 // pred_check
    _
  $region27: #{tpu_custom_call.1} parent=0 // pred_check_branch
    %139 = sbr.rel (0) target = $region29
  $region28: #{tpu_custom_call.1} parent=0 // pred_region
    _
  $region29: #{tpu_custom_call.1} parent=0 // pred_fallthru
    _

</llo_original>
